<compile_context>
chip_gen: v5e
topology: v5e:2x2
jax: 0.10.0
libtpu: 0.0.40
codegen_flags: <defaults>
</compile_context>

<pallas_src>
import jax
import jax.numpy as jnp
from jax.experimental import pallas as pl
from jax.experimental.pallas import tpu as pltpu


# ---------------------------------------------------------------------------
# Trace-time glue: 1-D bicubic resize matrix (Keys cubic, a=-0.5, half-pixel).
# ---------------------------------------------------------------------------
def _cubic_kernel(x, a=-0.5):
    x = jnp.abs(x)
    w1 = (a + 2.0) * x**3 - (a + 3.0) * x**2 + 1.0
    w2 = a * x**3 - 5.0 * a * x**2 + 8.0 * a * x - 4.0 * a
    return jnp.where(x <= 1.0, w1, jnp.where(x < 2.0, w2, 0.0))


def _resize_matrix(out_size, in_size):
    i = jnp.arange(out_size)
    src = (i + 0.5) * (in_size / out_size) - 0.5
    base = jnp.floor(src).astype(jnp.int32)
    mat = jnp.zeros((out_size, in_size), dtype=jnp.float32)
    for k in range(-1, 3):
        idx = jnp.clip(base + k, 0, in_size - 1)
        w = _cubic_kernel(src - (base + k).astype(jnp.float32))
        mat = mat.at[i, idx].add(w.astype(jnp.float32))
    return mat / mat.sum(axis=1, keepdims=True)


def _round_up(x, m):
    return ((x + m - 1) // m) * m


# ---------------------------------------------------------------------------
# Pallas kernel: one grid step = one block of P image planes.
#   x_ref    : (P*H_in, W_in)   planes stacked along rows
#   rwt_ref  : (W_in,  Wp)      width-resize matrix, pre-transposed, lane-padded
#   rh_ref   : (P*Hp,  P*H_in)  block-diag height-resize, per-channel scale folded
#   bias_ref : (P*Hp,  Wp)      per-channel bias, lane-dense
#   o_ref    : (P*Hp,  Wp)
# ---------------------------------------------------------------------------
def _preprocess_kernel(x_ref, rwt_ref, rh_ref, bias_ref, o_ref):
    # Width contraction: one big MXU matmul (large M = P*H_in, lane-dense N = Wp).
    t = jnp.dot(x_ref[...], rwt_ref[...], preferred_element_type=jnp.float32)
    # Height contraction for all P planes at once via the block-diagonal matrix:
    # a second big 2-D matmul, no in-kernel transpose / relayout.
    y = jnp.dot(rh_ref[...], t, preferred_element_type=jnp.float32)
    # Fused normalize (scale already folded into rh_ref rows).
    o_ref[...] = y + bias_ref[...]


def _choose_plane_block(nc, c, h, w, hp, wp, budget_bytes=20 * 1024 * 1024):
    """Largest multiple-of-C plane block whose f32 working set fits the budget."""
    def cost(p):
        x_blk = p * h * w                       # input block
        out_blk = p * hp * wp                   # output block
        interm = p * h * wp                     # intermediate t
        mats = (p * hp) * (p * h) + w * wp + p * hp * wp
        return 4 * (2 * x_blk + 2 * out_blk + interm + mats)  # double-buffered IO
    p = c
    while p < nc and cost(p + c) <= budget_bytes:
        p += c
    return p


def feature_extractor(images,
                      *,
                      size=8,
                      image_mean=(0.5, 0.5, 0.5),
                      image_std=(0.5, 0.5, 0.5),
                      rescale_factor=1.0 / 255.0):
    """JAX/Pallas equivalent of BeitFeatureExtractor.__call__(images, return_tensors='pt').

    images: NCHW array with raw pixel values in [0, 255].
    Returns {"pixel_values": float32 NCHW array of shape (N, C, size, size)}.
    """
    images = jnp.asarray(images, jnp.float32)
    n, c, h, w = images.shape
    h_out = w_out = int(size)
    nc = n * c

    hp = _round_up(h_out, 8)        # sublane-aligned output height
    wp = _round_up(w_out, 128)      # lane-dense output width (unmasked stores)

    p = _choose_plane_block(nc, c, h, w, hp, wp)
    if (p * h) % 8 != 0:
        # Block row-count must be sublane-aligned unless it spans the whole
        # array -> fall back to a single block covering everything.
        p = nc
    num_blocks = pl.cdiv(nc, p)
    nc_pad = num_blocks * p

    # --- resize matrices + folded normalize constants (trace-time) --------
    rh = _resize_matrix(h_out, h)                                # (h_out, h)
    rw = _resize_matrix(w_out, w)                                # (w_out, w)
    rwt = jnp.zeros((w, wp), jnp.float32).at[:, :w_out].set(rw.T)

    mean = jnp.asarray(image_mean, jnp.float32)
    std = jnp.asarray(image_std, jnp.float32)
    scale_c = rescale_factor / std                               # (c,)
    bias_c = -mean / std                                         # (c,)
    # P is a multiple of C, so plane index within a block maps to channel p%c
    # identically for every grid step -> BigRh / bias are grid-invariant.
    plane_scale = jnp.tile(scale_c, p // c)                      # (p,)
    plane_bias = jnp.tile(bias_c, p // c)                        # (p,)

    rh_pad = jnp.zeros((hp, h), jnp.float32).at[:h_out, :].set(rh)
    eye = jnp.eye(p, dtype=jnp.float32)
    big_rh = (eye[:, None, :, None]
              * plane_scale[:, None, None, None]
              * rh_pad[None, :, None, :]).reshape(p * hp, p * h)
    bias_slab = jnp.broadcast_to(plane_bias[:, None, None],
                                 (p, hp, wp)).reshape(p * hp, wp)

    # --- data layout: planes stacked along rows (free reshape, no transpose)
    x2d = images.reshape(nc * h, w)
    if nc_pad != nc:
        x2d = jnp.pad(x2d, ((0, (nc_pad - nc) * h), (0, 0)))

    out2d = pl.pallas_call(
        _preprocess_kernel,
        out_shape=jax.ShapeDtypeStruct((nc_pad * hp, wp), jnp.float32),
        grid=(num_blocks,),
        in_specs=[
            pl.BlockSpec((p * h, w), lambda i: (i, 0)),          # plane block
            pl.BlockSpec((w, wp), lambda i: (0, 0)),             # Rw^T (invariant)
            pl.BlockSpec((p * hp, p * h), lambda i: (0, 0)),     # BigRh (invariant)
            pl.BlockSpec((p * hp, wp), lambda i: (0, 0)),        # bias (invariant)
        ],
        out_specs=pl.BlockSpec((p * hp, wp), lambda i: (i, 0)),
        compiler_params=pltpu.CompilerParams(
            dimension_semantics=("parallel",),
            vmem_limit_bytes=32 * 1024 * 1024),
    )(x2d, rwt, big_rh, bias_slab)

    out = out2d.reshape(nc_pad, hp, wp)[:nc, :h_out, :w_out]
    return {"pixel_values": out.reshape(n, c, h_out, w_out)}


if __name__ == "__main__":
    key = jax.random.PRNGKey(0)
    # Small synthetic "images": batch=2, 3 channels, 16x16, raw pixels in [0, 255].
    images = jax.random.uniform(key, (2, 3, 16, 16), jnp.float32,
                                minval=0.0, maxval=255.0)

    out = feature_extractor(images, size=8)
    pixel_values = jax.block_until_ready(out["pixel_values"])

    # Reference check in plain JAX (same resize matrices + rescale + normalize).
    rh = _resize_matrix(8, 16)
    rw = _resize_matrix(8, 16)
    resized = jnp.einsum("oh,nchw,pw->ncop", rh, images, rw)
    ref = (resized / 255.0 - 0.5) / 0.5

    assert pixel_values.shape == (2, 3, 8, 8)
    assert jnp.allclose(pixel_values, ref, atol=1e-4, rtol=1e-4)

    print("KERNEL_OK")
</pallas_src>

<mosaic_0001>
module attributes {stable_mosaic.version = 11 : i64} {
  func.func @_preprocess_kernel(%arg0: i32, %arg1: memref<96x16xf32, #tpu.memory_space<vmem>>, %arg2: memref<16x128xf32, #tpu.memory_space<vmem>>, %arg3: memref<48x96xf32, #tpu.memory_space<vmem>>, %arg4: memref<48x128xf32, #tpu.memory_space<vmem>>, %arg5: memref<48x128xf32, #tpu.memory_space<vmem>>) attributes {dimension_semantics = [#tpu.dimension_semantics<parallel>], iteration_bounds = array<i64: 1>, scalar_prefetch = 0 : i64, scratch_operands = 0 : i64, tpu.core_type = #tpu.core_type<tc>, window_params = [{transform_indices = @transform_0, window_bounds = array<i64: 96, 16>}, {pipeline_mode = #tpu.pipeline_mode<synchronous>, transform_indices = @transform_1, window_bounds = array<i64: 16, 128>}, {pipeline_mode = #tpu.pipeline_mode<synchronous>, transform_indices = @transform_2, window_bounds = array<i64: 48, 96>}, {pipeline_mode = #tpu.pipeline_mode<synchronous>, transform_indices = @transform_3, window_bounds = array<i64: 48, 128>}, {transform_indices = @transform_4, window_bounds = array<i64: 48, 128>}]} {
    %c0 = arith.constant 0 : index
    %c0_0 = arith.constant 0 : index
    %0 = vector.load %arg1[%c0, %c0_0] : memref<96x16xf32, #tpu.memory_space<vmem>>, vector<96x16xf32>
    %c0_1 = arith.constant 0 : index
    %c0_2 = arith.constant 0 : index
    %1 = vector.load %arg2[%c0_1, %c0_2] : memref<16x128xf32, #tpu.memory_space<vmem>>, vector<16x128xf32>
    %cst = arith.constant dense<0.000000e+00> : vector<96x128xf32>
    %2 = tpu.matmul %0, %1, %cst {dimension_numbers = #tpu.dot_dimension_numbers<[1], [0], [0], [1], [0, 0, 1, 1], [], []>} : vector<96x16xf32>, vector<16x128xf32>, vector<96x128xf32> -> vector<96x128xf32>
    %c0_3 = arith.constant 0 : index
    %c0_4 = arith.constant 0 : index
    %3 = vector.load %arg3[%c0_3, %c0_4] : memref<48x96xf32, #tpu.memory_space<vmem>>, vector<48x96xf32>
    %cst_5 = arith.constant dense<0.000000e+00> : vector<48x128xf32>
    %4 = tpu.matmul %3, %2, %cst_5 {dimension_numbers = #tpu.dot_dimension_numbers<[1], [0], [0], [1], [0, 0, 1, 1], [], []>} : vector<48x96xf32>, vector<96x128xf32>, vector<48x128xf32> -> vector<48x128xf32>
    %c0_6 = arith.constant 0 : index
    %c0_7 = arith.constant 0 : index
    %5 = vector.load %arg4[%c0_6, %c0_7] : memref<48x128xf32, #tpu.memory_space<vmem>>, vector<48x128xf32>
    %6 = arith.addf %4, %5 : vector<48x128xf32>
    %c0_8 = arith.constant 0 : index
    %c0_9 = arith.constant 0 : index
    %7 = vector.load %arg5[%c0_8, %c0_9] : memref<48x128xf32, #tpu.memory_space<vmem>>, vector<48x128xf32>
    tpu.vector_store %arg5[%c0_8, %c0_9], %6 {strides = array<i32>} : memref<48x128xf32, #tpu.memory_space<vmem>>, vector<48x128xf32>,
    return
  }
  func.func @transform_0(%arg0: i32) -> (i32, i32) {
    %c0_i32 = arith.constant 0 : i32
    %c0_i32_0 = arith.constant 0 : i32
    return %arg0, %c0_i32 : i32, i32
  }
  func.func @transform_1(%arg0: i32) -> (i32, i32) {
    %c0_i32 = arith.constant 0 : i32
    %c0_i32_0 = arith.constant 0 : i32
    %c0_i32_1 = arith.constant 0 : i32
    return %c0_i32, %c0_i32_0 : i32, i32
  }
  func.func @transform_2(%arg0: i32) -> (i32, i32) {
    %c0_i32 = arith.constant 0 : i32
    %c0_i32_0 = arith.constant 0 : i32
    %c0_i32_1 = arith.constant 0 : i32
    return %c0_i32, %c0_i32_0 : i32, i32
  }
  func.func @transform_3(%arg0: i32) -> (i32, i32) {
    %c0_i32 = arith.constant 0 : i32
    %c0_i32_0 = arith.constant 0 : i32
    %c0_i32_1 = arith.constant 0 : i32
    return %c0_i32, %c0_i32_0 : i32, i32
  }
  func.func @transform_4(%arg0: i32) -> (i32, i32) {
    %c0_i32 = arith.constant 0 : i32
    %c0_i32_0 = arith.constant 0 : i32
    return %arg0, %c0_i32 : i32, i32
  }
}

</mosaic_0001>

<llo_original>
// kernel: tpu_custom_call.1
$region0: #{tpu_custom_call.1}
  #allocation0 [shape = 'u32[]', space=smem, size = 0x4, offset = 0x4, fixed_abs, tag = 'smem constant byte address 0x4 - core index']
  #allocation1 [shape = 'u32[72,128]{1,0:T(1,128)}', space=vmem, size = 0x9000, scoped, tag = 'internal scratch']
  %s0 = inlined_call_operand.vmem [shape: f32[96,16], index: 0, kind: input, shape index: {}]
  %s1 = inlined_call_operand.vmem [shape: f32[16,128], index: 1, kind: input, shape index: {}]
  %s2 = inlined_call_operand.vmem [shape: f32[48,96], index: 2, kind: input, shape index: {}]
  %s3 = inlined_call_operand.vmem [shape: f32[48,128], index: 3, kind: input, shape index: {}]
  %s4 = inlined_call_operand.hbm [shape: f32[48,128], index: 4, kind: output, shape index: {}]
  %s5 = sld [smem:[#allocation0]]
  $region26: #{tpu_custom_call.1} parent=0
    _
  %s7 = ssub.s32 1, %s5
  %s8 = scalar_select 0, %s7, %s5
  $region1: #{tpu_custom_call.1} parent=0
    #allocation2 [shape = 'u8[24576]{0}', space=vmem, size = 0x6000, scoped, tag = 'output window, operand 0, single buffered']
    #allocation3 [shape = 's32[1]{0}', space=sflag, size = 0x4, scoped, tag = 'scoped memory for tpu_custom_call.1']
    %9 = vsyncpa [#allocation3], 0
    // Predicated region
    $region2: #{tpu_custom_call.1} parent=1 // pred_check
      _
    $region3: #{tpu_custom_call.1} parent=1 // pred_check_branch
      %11 = sbr.rel (0) target = $region5
    $region4: #{tpu_custom_call.1} parent=1 // pred_region
      _
    $region5: #{tpu_custom_call.1} parent=1 // pred_fallthru
      _
    // Predicated region
    $region6: #{tpu_custom_call.1} parent=1 // pred_check
      _
    $region7: #{tpu_custom_call.1} parent=1 // pred_check_branch
      %13 = sbr.rel (0) target = $region9
    $region8: #{tpu_custom_call.1} parent=1 // pred_region
      _
    $region9: #{tpu_custom_call.1} parent=1 // pred_fallthru
      _
    // Predicated region
    $region10: #{tpu_custom_call.1} parent=1 // pred_check
      _
    $region11: #{tpu_custom_call.1} parent=1 // pred_check_branch
      %15 = sbr.rel (0) target = $region13
    $region12: #{tpu_custom_call.1} parent=1 // pred_region
      _
    $region13: #{tpu_custom_call.1} parent=1 // pred_fallthru
      _
    // Predicated region
    $region14: #{tpu_custom_call.1} parent=1 // pred_check
      _
    $region15: #{tpu_custom_call.1} parent=1 // pred_check_branch
      %17 = sbr.rel (0) target = $region17
    $region16: #{tpu_custom_call.1} parent=1 // pred_region
      _
    $region17: #{tpu_custom_call.1} parent=1 // pred_fallthru
      _
    %v18 = vld [vmem:[%s0] sm:$0xff]
    %v19 = vld [vmem:[%s0 + $0x8] sm:$0xff]
    %v20 = vld [vmem:[%s0 + $0x10] sm:$0xff]
    %v21 = vld [vmem:[%s0 + $0x18] sm:$0xff]
    %v22 = vld [vmem:[%s0 + $0x20] sm:$0xff]
    %v23 = vld [vmem:[%s0 + $0x28] sm:$0xff]
    %v24 = vld [vmem:[%s0 + $0x30] sm:$0xff]
    %v25 = vld [vmem:[%s0 + $0x38] sm:$0xff]
    %v26 = vld [vmem:[%s0 + $0x40] sm:$0xff]
    %v27 = vld [vmem:[%s0 + $0x48] sm:$0xff]
    %v28 = vld [vmem:[%s0 + $0x50] sm:$0xff]
    %v29 = vld [vmem:[%s0 + $0x58] sm:$0xff]
    %v30 = vld [vmem:[%s1] sm:$0xff]
    %v31 = vld [vmem:[%s1 + $0x8] sm:$0xff]
    %vm32 = vcmask 130048
    %v34 = vsel %vm32, %v18, 0
    %v37 = vsel %vm32, %v19, 0
    %v40 = vsel %vm32, %v20, 0
    %v43 = vsel %vm32, %v21, 0
    %v46 = vsel %vm32, %v22, 0
    %v49 = vsel %vm32, %v23, 0
    %v52 = vsel %vm32, %v24, 0
    %v55 = vsel %vm32, %v25, 0
    %v58 = vsel %vm32, %v26, 0
    %v61 = vsel %vm32, %v27, 0
    %v64 = vsel %vm32, %v28, 0
    %v67 = vsel %vm32, %v29, 0
    %69 = vmatpush.msra.mxu0 0.0
    %70 = vmatpush.msra.mxu0 0.0
    %71 = vmatpush.msra.mxu0 0.0
    %72 = vmatpush.msra.mxu0 0.0
    %73 = vmatpush.msra.mxu0 0.0
    %74 = vmatpush.msra.mxu0 0.0
    %75 = vmatpush.msra.mxu0 0.0
    %76 = vmatpush.msra.mxu0 0.0
    %77 = vmatpush.msra.mxu0 0.0
    %78 = vmatpush.msra.mxu0 0.0
    %79 = vmatpush.msra.mxu0 0.0
    %80 = vmatpush.msra.mxu0 0.0
    %81 = vmatpush.msra.mxu0 0.0
    %82 = vmatpush.msra.mxu0 0.0
    %83 = vmatpush.msra.mxu0 %v31
    %84 = vmatpush.msra.mxu0 %v30
    %85 = vmatmul.f32.gmra.mxu0 %v34
    %v86 = vpop.f32.mrf.mxu0
    %v87 = vadd.f32 0.0, %v86
    %88 = vmatmul.f32.gmra.mxu0 %v37
    %v89 = vpop.f32.mrf.mxu0
    %v90 = vadd.f32 0.0, %v89
    %91 = vmatmul.f32.gmra.mxu0 %v40
    %v92 = vpop.f32.mrf.mxu0
    %v93 = vadd.f32 0.0, %v92
    %94 = vmatmul.f32.gmra.mxu0 %v43
    %v95 = vpop.f32.mrf.mxu0
    %v96 = vadd.f32 0.0, %v95
    %97 = vmatmul.f32.gmra.mxu0 %v46
    %v98 = vpop.f32.mrf.mxu0
    %v99 = vadd.f32 0.0, %v98
    %100 = vmatmul.f32.gmra.mxu0 %v49
    %v101 = vpop.f32.mrf.mxu0
    %v102 = vadd.f32 0.0, %v101
    %103 = vmatmul.f32.gmra.mxu0 %v52
    %v104 = vpop.f32.mrf.mxu0
    %v105 = vadd.f32 0.0, %v104
    %106 = vmatmul.f32.gmra.mxu0 %v55
    %v107 = vpop.f32.mrf.mxu0
    %v108 = vadd.f32 0.0, %v107
    %109 = vmatmul.f32.gmra.mxu0 %v58
    %v110 = vpop.f32.mrf.mxu0
    %v111 = vadd.f32 0.0, %v110
    %112 = vmatmul.f32.gmra.mxu0 %v61
    %v113 = vpop.f32.mrf.mxu0
    %v114 = vadd.f32 0.0, %v113
    %115 = vmatmul.f32.gmra.mxu0 %v64
    %v116 = vpop.f32.mrf.mxu0
    %v117 = vadd.f32 0.0, %v116
    %118 = vmatmul.f32.gmra.mxu0 %v67
    %v119 = vpop.f32.mrf.mxu0
    %v120 = vadd.f32 0.0, %v119
    %121 = vdwg.mxu0
    %v122 = vld [vmem:[%s2] sm:$0xff]
    %v123 = vld [vmem:[%s2 + $0x8] sm:$0xff]
    %v124 = vld [vmem:[%s2 + $0x10] sm:$0xff]
    %v125 = vld [vmem:[%s2 + $0x18] sm:$0xff]
    %v126 = vld [vmem:[%s2 + $0x20] sm:$0xff]
    %v127 = vld [vmem:[%s2 + $0x28] sm:$0xff]
    %v128 = vld [vmem:[%s3] sm:$0xff]
    %v129 = vld [vmem:[%s3 + $0x8] sm:$0xff]
    %v130 = vld [vmem:[%s3 + $0x10] sm:$0xff]
    %v131 = vld [vmem:[%s3 + $0x18] sm:$0xff]
    %v132 = vld [vmem:[%s3 + $0x20] sm:$0xff]
    %v133 = vld [vmem:[%s3 + $0x28] sm:$0xff]
    %vm134 = vcmask 785408
    %v136 = vsel %vm134, %v122, 0
    %v139 = vsel %vm134, %v123, 0
    %v142 = vsel %vm134, %v124, 0
    %v145 = vsel %vm134, %v125, 0
    %v148 = vsel %vm134, %v126, 0
    %v151 = vsel %vm134, %v127, 0
    %153 = vmatpush.msra.mxu0 0.0
    %154 = vmatpush.msra.mxu0 0.0
    %155 = vmatpush.msra.mxu0 0.0
    %156 = vmatpush.msra.mxu0 0.0
    %157 = vmatpush.msra.mxu0 %v120
    %158 = vmatpush.msra.mxu0 %v117
    %159 = vmatpush.msra.mxu0 %v114
    %160 = vmatpush.msra.mxu0 %v111
    %161 = vmatpush.msra.mxu0 %v108
    %162 = vmatpush.msra.mxu0 %v105
    %163 = vmatpush.msra.mxu0 %v102
    %164 = vmatpush.msra.mxu0 %v99
    %165 = vmatpush.msra.mxu0 %v96
    %166 = vmatpush.msra.mxu0 %v93
    %167 = vmatpush.msra.mxu0 %v90
    %168 = vmatpush.msra.mxu0 %v87
    %169 = vmatmul.f32.gmra.mxu0 %v136
    %v170 = vpop.f32.mrf.mxu0
    %v171 = vadd.f32 %v128, %v170
    %172 = vmatmul.f32.gmra.mxu0 %v139
    %v173 = vpop.f32.mrf.mxu0
    %v174 = vadd.f32 %v129, %v173
    %175 = vmatmul.f32.gmra.mxu0 %v142
    %v176 = vpop.f32.mrf.mxu0
    %v177 = vadd.f32 %v130, %v176
    %178 = vmatmul.f32.gmra.mxu0 %v145
    %v179 = vpop.f32.mrf.mxu0
    %v180 = vadd.f32 %v131, %v179
    %181 = vmatmul.f32.gmra.mxu0 %v148
    %v182 = vpop.f32.mrf.mxu0
    %v183 = vadd.f32 %v132, %v182
    %184 = vmatmul.f32.gmra.mxu0 %v151
    %v185 = vpop.f32.mrf.mxu0
    %v186 = vadd.f32 %v133, %v185
    %187 = vdwg.mxu0
    %188 = vst [vmem:[#allocation2] sm:$0xff] %v171
    %189 = vst [vmem:[#allocation2 + $0x8] sm:$0xff] %v174
    %190 = vst [vmem:[#allocation2 + $0x10] sm:$0xff] %v177
    %191 = vst [vmem:[#allocation2 + $0x18] sm:$0xff] %v180
    %192 = vst [vmem:[#allocation2 + $0x20] sm:$0xff] %v183
    %193 = vst [vmem:[#allocation2 + $0x28] sm:$0xff] %v186
    // Predicated region
    $region18: #{tpu_custom_call.1} parent=1 // pred_check
      _
    $region19: #{tpu_custom_call.1} parent=1 // pred_check_branch
      %195 = sbr.rel (0) target = $region21
    $region20: #{tpu_custom_call.1} parent=1 // pred_region
      %197 = vsyncadd [#allocation3], 0
      %s198 = sshll.u32 [#allocation2], 4
      %s199 = int_to_ptr.vmem [resolvable:$true] %s198
      %s200 = sshll.u32 %s4, 4
      %s201 = int_to_ptr.hbm [resolvable:$true] %s200
      %206 = dma.vmem_to_hbm [thread:$0]  %s199, 768, %s201, [#allocation3], 128, 128, 8
    $region21: #{tpu_custom_call.1} parent=1 // pred_fallthru
      _
    // Predicated region
    $region22: #{tpu_custom_call.1} parent=1 // pred_check
      _
    $region23: #{tpu_custom_call.1} parent=1 // pred_check_branch
      %208 = sbr.rel (0) target = $region25
    $region24: #{tpu_custom_call.1} parent=1 // pred_region
      %210 = dma.done [#allocation3], 768
    $region25: #{tpu_custom_call.1} parent=1 // pred_fallthru
      _
    %211 = vsyncpa [#allocation3], 1

</llo_original>
